<compile_context>
chip_gen: v7x
topology: tpu7x:2x2x1
jax: 0.10.0
libtpu: 0.0.40
codegen_flags: <defaults>
</compile_context>

<pallas_src>
import jax
import jax.numpy as jnp
from jax.experimental import pallas as pl
from jax.experimental.pallas import tpu as pltpu

# true (unpadded) layer sizes: input_size=16 for the example
LAYER_SIZES = [16, 100, 100, 50, 50, 2]
N_LAYERS = len(LAYER_SIZES) - 1     # 5
PAD = 128                           # lane-aligned padded width for every dim
N_CLASSES = 2
MAX_TILE_B = 1024                   # rows per grid step (<= ~3 MiB VMEM, fits v7x)
NEG_INF = -1e30                     # padded-logit mask baked into b5 (f32 only!)


def _round_up(x, m):
    return (x + m - 1) // m * m


def _choose_tiling(B):
    """Pick (tile_b, n_tiles).

    * tile_b is a multiple of 32 so each interleaved half-chain is a multiple
      of 16 rows (clean bf16 sublane packing).
    * n_tiles is even for B > 32 so the grid divides evenly over v7x's two
      TensorCores, and is grown in steps of 2 until tile_b <= MAX_TILE_B,
      which also minimizes batch padding for large B.
    """
    if B <= 32:
        return 32, 1
    n = 2
    while True:
        tile_b = _round_up(-(-B // n), 32)
        if tile_b <= MAX_TILE_B:
            return tile_b, n
        n += 2


def mlp_logsoftmax_kernel(x_ref, w_ref, b_ref, o_ref):
    """Fused 5-layer MLP (+ReLU) + log_softmax for one (tile_b, 128) batch tile.

    x_ref : (tile_b, 128) bf16      -- streamed per grid step
    w_ref : (5, 128, 128) bf16      -- VMEM-resident (constant index_map)
    b_ref : (5, 1, 128)  f32        -- VMEM-resident; b5 padded cols = -1e30
    o_ref : (tile_b, 128) f32       -- lane-dense log_softmax slab

    The tile is split into two independent half-chains that are interleaved
    layer-by-layer so MXU fill/drain of one half overlaps the VPU ReLU/cast
    (and, at the end, the EUP exp / XLU reduce) of the other.
    """
    half = x_ref.shape[0] // 2
    h0 = x_ref[:half, :]
    h1 = x_ref[half:, :]

    # 4 hidden layers: bf16 operands, f32 MXU accumulation, f32 bias+ReLU,
    # downcast to bf16 only at the next dot's input.
    for l in range(N_LAYERS - 1):
        w = w_ref[l]                       # (128,128) bf16
        b = b_ref[l]                       # (1,128)   f32
        a0 = jnp.dot(h0, w, preferred_element_type=jnp.float32)
        a1 = jnp.dot(h1, w, preferred_element_type=jnp.float32)
        h0 = jnp.maximum(a0 + b, 0.0).astype(jnp.bfloat16)
        h1 = jnp.maximum(a1 + b, 0.0).astype(jnp.bfloat16)

    # Output layer: padded columns of b5 are -1e30 (and padded w5 cols are 0),
    # so padded logits are ~-1e30 and vanish under the softmax reduction.
    w = w_ref[N_LAYERS - 1]
    b = b_ref[N_LAYERS - 1]
    logits0 = jnp.dot(h0, w, preferred_element_type=jnp.float32) + b
    logits1 = jnp.dot(h1, w, preferred_element_type=jnp.float32) + b

    def logsoftmax(logits):
        m = jnp.max(logits, axis=-1, keepdims=True)
        lse = jnp.log(jnp.sum(jnp.exp(logits - m), axis=-1, keepdims=True)) + m
        return logits - lse

    # Lane-dense full-width stores (unmasked vst); real classes sliced in JAX.
    o_ref[:half, :] = logsoftmax(logits0)
    o_ref[half:, :] = logsoftmax(logits1)


def init_params(key, layer_sizes):
    """Deterministic Linear params; weights stored as (in, out), f32."""
    params = []
    for i in range(len(layer_sizes) - 1):
        fan_in, fan_out = layer_sizes[i], layer_sizes[i + 1]
        key, wk, bk = jax.random.split(key, 3)
        bound = 1.0 / jnp.sqrt(fan_in)
        w = jax.random.uniform(wk, (fan_in, fan_out), jnp.float32, -bound, bound)
        b = jax.random.uniform(bk, (fan_out,), jnp.float32, -bound, bound)
        params.append((w, b))
    return params


def prepare_params(params):
    """One-time prep (hoisted out of the forward).

    Returns:
      w_packed : (5, 128, 128) bf16 -- zero-padded weights (padded cols of the
                 final layer are EXACT zeros, required by the -1e30 mask).
      b_packed : (5, 1, 128) f32    -- zero-padded biases; the final layer's
                 padded columns hold -1e30.  MUST stay f32.
    """
    ws, bs = [], []
    last = len(params) - 1
    for idx, (w, b) in enumerate(params):
        wp = jnp.zeros((PAD, PAD), jnp.float32).at[: w.shape[0], : w.shape[1]].set(w)
        if idx == last:
            bp = jnp.full((1, PAD), NEG_INF, jnp.float32).at[0, : b.shape[0]].set(b)
        else:
            bp = jnp.zeros((1, PAD), jnp.float32).at[0, : b.shape[0]].set(b)
        ws.append(wp.astype(jnp.bfloat16))
        bs.append(bp)
    w_packed = jnp.stack(ws)   # (5, 128, 128) bf16
    b_packed = jnp.stack(bs)   # (5, 1, 128)   f32
    assert b_packed.dtype == jnp.float32  # -1e30 mask requires f32 bias
    return w_packed, b_packed


@jax.jit
def classifier_forward(x, w_packed, b_packed):
    B, input_size = x.shape
    tile_b, n_tiles = _choose_tiling(B)           # static under jit
    b_pad = tile_b * n_tiles

    # pad batch rows and feature lanes; stream x in bf16 (halves input DMA)
    x_pad = jnp.pad(x.astype(jnp.bfloat16),
                    ((0, b_pad - B), (0, PAD - input_size)))

    out = pl.pallas_call(
        mlp_logsoftmax_kernel,
        out_shape=jax.ShapeDtypeStruct((b_pad, PAD), jnp.float32),
        grid=(n_tiles,),
        in_specs=[
            pl.BlockSpec((tile_b, PAD), lambda i: (i, 0)),        # x: streamed
            pl.BlockSpec((N_LAYERS, PAD, PAD), lambda i: (0, 0, 0)),  # weights: resident
            pl.BlockSpec((N_LAYERS, 1, PAD), lambda i: (0, 0, 0)),    # biases: resident
        ],
        out_specs=pl.BlockSpec((tile_b, PAD), lambda i: (i, 0)),  # lane-dense slab
        compiler_params=pltpu.CompilerParams(
            dimension_semantics=("parallel",),        # shard batch over 2 TCs (v7x)
            vmem_limit_bytes=16 * 1024 * 1024),       # right-sized; need is <~3 MiB
    )(x_pad, w_packed, b_packed)

    # narrow slice happens in XLA, outside the kernel's store path
    return out[:B, :N_CLASSES]


def reference_forward_bf16(x, params):
    """Pure-JAX reference mirroring the kernel's bf16-operand / f32-accumulate
    arithmetic (dropout is identity in eval)."""
    h = x.astype(jnp.bfloat16)
    for w, b in params[:-1]:
        acc = jnp.dot(h, w.astype(jnp.bfloat16),
                      preferred_element_type=jnp.float32)
        h = jnp.maximum(acc + b, 0.0).astype(jnp.bfloat16)
    w, b = params[-1]
    logits = jnp.dot(h, w.astype(jnp.bfloat16),
                     preferred_element_type=jnp.float32) + b
    return jax.nn.log_softmax(logits, axis=1)


if __name__ == "__main__":
    key = jax.random.PRNGKey(0)
    pkey, xkey, xkey2 = jax.random.split(key, 3)

    input_size = LAYER_SIZES[0]
    params = init_params(pkey, LAYER_SIZES)
    w_packed, b_packed = prepare_params(params)   # padded/bf16, built once

    # small-batch case (single 32-row tile, single grid step)
    B = 2
    x = jax.random.normal(xkey, (B, input_size), jnp.float32)
    out = jax.block_until_ready(classifier_forward(x, w_packed, b_packed))
    ref = reference_forward_bf16(x, params)
    assert out.shape == (B, N_CLASSES), out.shape
    assert jnp.allclose(out, ref, atol=1e-4, rtol=1e-4), (out, ref)

    # larger batch exercising the 2-step grid (600 -> 2 tiles of 320 rows,
    # 8 padded rows, balanced across v7x's two TensorCores)
    B2 = 600
    x2 = jax.random.normal(xkey2, (B2, input_size), jnp.float32)
    out2 = jax.block_until_ready(classifier_forward(x2, w_packed, b_packed))
    ref2 = reference_forward_bf16(x2, params)
    assert out2.shape == (B2, N_CLASSES), out2.shape
    assert jnp.allclose(out2, ref2, atol=1e-4, rtol=1e-4)

    print("KERNEL_OK")
</pallas_src>

<mosaic_0001>
module attributes {stable_mosaic.version = 11 : i64} {
  func.func @mlp_logsoftmax_kernel(%arg0: i32, %arg1: memref<32x128xbf16, #tpu.memory_space<vmem>>, %arg2: memref<5x128x128xbf16, #tpu.memory_space<vmem>>, %arg3: memref<5x1x128xf32, #tpu.memory_space<vmem>>, %arg4: memref<32x128xf32, #tpu.memory_space<vmem>>) attributes {dimension_semantics = [#tpu.dimension_semantics<parallel>], iteration_bounds = array<i64: 1>, scalar_prefetch = 0 : i64, scratch_operands = 0 : i64, tpu.core_type = #tpu.core_type<tc>, window_params = [{transform_indices = @transform_0, window_bounds = array<i64: 32, 128>}, {pipeline_mode = #tpu.pipeline_mode<synchronous>, transform_indices = @transform_1, window_bounds = array<i64: 5, 128, 128>}, {pipeline_mode = #tpu.pipeline_mode<synchronous>, transform_indices = @transform_2, window_bounds = array<i64: 5, 1, 128>}, {transform_indices = @transform_3, window_bounds = array<i64: 32, 128>}]} {
    %c0 = arith.constant 0 : index
    %c0_0 = arith.constant 0 : index
    %0 = vector.load %arg1[%c0, %c0_0] : memref<32x128xbf16, #tpu.memory_space<vmem>>, vector<16x128xbf16>
    %c16 = arith.constant 16 : index
    %c0_1 = arith.constant 0 : index
    %1 = vector.load %arg1[%c16, %c0_1] : memref<32x128xbf16, #tpu.memory_space<vmem>>, vector<16x128xbf16>
    %c0_2 = arith.constant 0 : index
    %c0_3 = arith.constant 0 : index
    %c0_4 = arith.constant 0 : index
    %2 = vector.load %arg2[%c0_2, %c0_3, %c0_4] : memref<5x128x128xbf16, #tpu.memory_space<vmem>>, vector<1x128x128xbf16>
    %3 = vector.shape_cast %2 : vector<1x128x128xbf16> to vector<128x128xbf16>
    %c0_5 = arith.constant 0 : index
    %c0_6 = arith.constant 0 : index
    %c0_7 = arith.constant 0 : index
    %4 = vector.load %arg3[%c0_5, %c0_6, %c0_7] : memref<5x1x128xf32, #tpu.memory_space<vmem>>, vector<1x1x128xf32>
    %5 = vector.shape_cast %4 : vector<1x1x128xf32> to vector<1x128xf32>
    %cst = arith.constant dense<0.000000e+00> : vector<16x128xf32>
    %6 = tpu.matmul %0, %3, %cst {dimension_numbers = #tpu.dot_dimension_numbers<[1], [0], [0], [1], [0, 0, 1, 1], [], []>} : vector<16x128xbf16>, vector<128x128xbf16>, vector<16x128xf32> -> vector<16x128xf32>
    %cst_8 = arith.constant dense<0.000000e+00> : vector<16x128xf32>
    %7 = tpu.matmul %1, %3, %cst_8 {dimension_numbers = #tpu.dot_dimension_numbers<[1], [0], [0], [1], [0, 0, 1, 1], [], []>} : vector<16x128xbf16>, vector<128x128xbf16>, vector<16x128xf32> -> vector<16x128xf32>
    %8 = vector.broadcast %5 : vector<1x128xf32> to vector<16x128xf32>
    %9 = arith.addf %6, %8 : vector<16x128xf32>
    %cst_9 = arith.constant 0.000000e+00 : f32
    %10 = vector.broadcast %cst_9 : f32 to vector<16x128xf32>
    %11 = arith.maximumf %9, %10 : vector<16x128xf32>
    %12 = arith.truncf %11 : vector<16x128xf32> to vector<16x128xbf16>
    %13 = vector.broadcast %5 : vector<1x128xf32> to vector<16x128xf32>
    %14 = arith.addf %7, %13 : vector<16x128xf32>
    %cst_10 = arith.constant 0.000000e+00 : f32
    %15 = vector.broadcast %cst_10 : f32 to vector<16x128xf32>
    %16 = arith.maximumf %14, %15 : vector<16x128xf32>
    %17 = arith.truncf %16 : vector<16x128xf32> to vector<16x128xbf16>
    %c1 = arith.constant 1 : index
    %c0_11 = arith.constant 0 : index
    %c0_12 = arith.constant 0 : index
    %18 = vector.load %arg2[%c1, %c0_11, %c0_12] : memref<5x128x128xbf16, #tpu.memory_space<vmem>>, vector<1x128x128xbf16>
    %19 = vector.shape_cast %18 : vector<1x128x128xbf16> to vector<128x128xbf16>
    %c1_13 = arith.constant 1 : index
    %c0_14 = arith.constant 0 : index
    %c0_15 = arith.constant 0 : index
    %20 = vector.load %arg3[%c1_13, %c0_14, %c0_15] : memref<5x1x128xf32, #tpu.memory_space<vmem>>, vector<1x1x128xf32>
    %21 = vector.shape_cast %20 : vector<1x1x128xf32> to vector<1x128xf32>
    %cst_16 = arith.constant dense<0.000000e+00> : vector<16x128xf32>
    %22 = tpu.matmul %12, %19, %cst_16 {dimension_numbers = #tpu.dot_dimension_numbers<[1], [0], [0], [1], [0, 0, 1, 1], [], []>} : vector<16x128xbf16>, vector<128x128xbf16>, vector<16x128xf32> -> vector<16x128xf32>
    %cst_17 = arith.constant dense<0.000000e+00> : vector<16x128xf32>
    %23 = tpu.matmul %17, %19, %cst_17 {dimension_numbers = #tpu.dot_dimension_numbers<[1], [0], [0], [1], [0, 0, 1, 1], [], []>} : vector<16x128xbf16>, vector<128x128xbf16>, vector<16x128xf32> -> vector<16x128xf32>
    %24 = vector.broadcast %21 : vector<1x128xf32> to vector<16x128xf32>
    %25 = arith.addf %22, %24 : vector<16x128xf32>
    %cst_18 = arith.constant 0.000000e+00 : f32
    %26 = vector.broadcast %cst_18 : f32 to vector<16x128xf32>
    %27 = arith.maximumf %25, %26 : vector<16x128xf32>
    %28 = arith.truncf %27 : vector<16x128xf32> to vector<16x128xbf16>
    %29 = vector.broadcast %21 : vector<1x128xf32> to vector<16x128xf32>
    %30 = arith.addf %23, %29 : vector<16x128xf32>
    %cst_19 = arith.constant 0.000000e+00 : f32
    %31 = vector.broadcast %cst_19 : f32 to vector<16x128xf32>
    %32 = arith.maximumf %30, %31 : vector<16x128xf32>
    %33 = arith.truncf %32 : vector<16x128xf32> to vector<16x128xbf16>
    %c2 = arith.constant 2 : index
    %c0_20 = arith.constant 0 : index
    %c0_21 = arith.constant 0 : index
    %34 = vector.load %arg2[%c2, %c0_20, %c0_21] : memref<5x128x128xbf16, #tpu.memory_space<vmem>>, vector<1x128x128xbf16>
    %35 = vector.shape_cast %34 : vector<1x128x128xbf16> to vector<128x128xbf16>
    %c2_22 = arith.constant 2 : index
    %c0_23 = arith.constant 0 : index
    %c0_24 = arith.constant 0 : index
    %36 = vector.load %arg3[%c2_22, %c0_23, %c0_24] : memref<5x1x128xf32, #tpu.memory_space<vmem>>, vector<1x1x128xf32>
    %37 = vector.shape_cast %36 : vector<1x1x128xf32> to vector<1x128xf32>
    %cst_25 = arith.constant dense<0.000000e+00> : vector<16x128xf32>
    %38 = tpu.matmul %28, %35, %cst_25 {dimension_numbers = #tpu.dot_dimension_numbers<[1], [0], [0], [1], [0, 0, 1, 1], [], []>} : vector<16x128xbf16>, vector<128x128xbf16>, vector<16x128xf32> -> vector<16x128xf32>
    %cst_26 = arith.constant dense<0.000000e+00> : vector<16x128xf32>
    %39 = tpu.matmul %33, %35, %cst_26 {dimension_numbers = #tpu.dot_dimension_numbers<[1], [0], [0], [1], [0, 0, 1, 1], [], []>} : vector<16x128xbf16>, vector<128x128xbf16>, vector<16x128xf32> -> vector<16x128xf32>
    %40 = vector.broadcast %37 : vector<1x128xf32> to vector<16x128xf32>
    %41 = arith.addf %38, %40 : vector<16x128xf32>
    %cst_27 = arith.constant 0.000000e+00 : f32
    %42 = vector.broadcast %cst_27 : f32 to vector<16x128xf32>
    %43 = arith.maximumf %41, %42 : vector<16x128xf32>
    %44 = arith.truncf %43 : vector<16x128xf32> to vector<16x128xbf16>
    %45 = vector.broadcast %37 : vector<1x128xf32> to vector<16x128xf32>
    %46 = arith.addf %39, %45 : vector<16x128xf32>
    %cst_28 = arith.constant 0.000000e+00 : f32
    %47 = vector.broadcast %cst_28 : f32 to vector<16x128xf32>
    %48 = arith.maximumf %46, %47 : vector<16x128xf32>
    %49 = arith.truncf %48 : vector<16x128xf32> to vector<16x128xbf16>
    %c3 = arith.constant 3 : index
    %c0_29 = arith.constant 0 : index
    %c0_30 = arith.constant 0 : index
    %50 = vector.load %arg2[%c3, %c0_29, %c0_30] : memref<5x128x128xbf16, #tpu.memory_space<vmem>>, vector<1x128x128xbf16>
    %51 = vector.shape_cast %50 : vector<1x128x128xbf16> to vector<128x128xbf16>
    %c3_31 = arith.constant 3 : index
    %c0_32 = arith.constant 0 : index
    %c0_33 = arith.constant 0 : index
    %52 = vector.load %arg3[%c3_31, %c0_32, %c0_33] : memref<5x1x128xf32, #tpu.memory_space<vmem>>, vector<1x1x128xf32>
    %53 = vector.shape_cast %52 : vector<1x1x128xf32> to vector<1x128xf32>
    %cst_34 = arith.constant dense<0.000000e+00> : vector<16x128xf32>
    %54 = tpu.matmul %44, %51, %cst_34 {dimension_numbers = #tpu.dot_dimension_numbers<[1], [0], [0], [1], [0, 0, 1, 1], [], []>} : vector<16x128xbf16>, vector<128x128xbf16>, vector<16x128xf32> -> vector<16x128xf32>
    %cst_35 = arith.constant dense<0.000000e+00> : vector<16x128xf32>
    %55 = tpu.matmul %49, %51, %cst_35 {dimension_numbers = #tpu.dot_dimension_numbers<[1], [0], [0], [1], [0, 0, 1, 1], [], []>} : vector<16x128xbf16>, vector<128x128xbf16>, vector<16x128xf32> -> vector<16x128xf32>
    %56 = vector.broadcast %53 : vector<1x128xf32> to vector<16x128xf32>
    %57 = arith.addf %54, %56 : vector<16x128xf32>
    %cst_36 = arith.constant 0.000000e+00 : f32
    %58 = vector.broadcast %cst_36 : f32 to vector<16x128xf32>
    %59 = arith.maximumf %57, %58 : vector<16x128xf32>
    %60 = arith.truncf %59 : vector<16x128xf32> to vector<16x128xbf16>
    %61 = vector.broadcast %53 : vector<1x128xf32> to vector<16x128xf32>
    %62 = arith.addf %55, %61 : vector<16x128xf32>
    %cst_37 = arith.constant 0.000000e+00 : f32
    %63 = vector.broadcast %cst_37 : f32 to vector<16x128xf32>
    %64 = arith.maximumf %62, %63 : vector<16x128xf32>
    %65 = arith.truncf %64 : vector<16x128xf32> to vector<16x128xbf16>
    %c4 = arith.constant 4 : index
    %c0_38 = arith.constant 0 : index
    %c0_39 = arith.constant 0 : index
    %66 = vector.load %arg2[%c4, %c0_38, %c0_39] : memref<5x128x128xbf16, #tpu.memory_space<vmem>>, vector<1x128x128xbf16>
    %67 = vector.shape_cast %66 : vector<1x128x128xbf16> to vector<128x128xbf16>
    %c4_40 = arith.constant 4 : index
    %c0_41 = arith.constant 0 : index
    %c0_42 = arith.constant 0 : index
    %68 = vector.load %arg3[%c4_40, %c0_41, %c0_42] : memref<5x1x128xf32, #tpu.memory_space<vmem>>, vector<1x1x128xf32>
    %69 = vector.shape_cast %68 : vector<1x1x128xf32> to vector<1x128xf32>
    %cst_43 = arith.constant dense<0.000000e+00> : vector<16x128xf32>
    %70 = tpu.matmul %60, %67, %cst_43 {dimension_numbers = #tpu.dot_dimension_numbers<[1], [0], [0], [1], [0, 0, 1, 1], [], []>} : vector<16x128xbf16>, vector<128x128xbf16>, vector<16x128xf32> -> vector<16x128xf32>
    %71 = vector.broadcast %69 : vector<1x128xf32> to vector<16x128xf32>
    %72 = arith.addf %70, %71 : vector<16x128xf32>
    %cst_44 = arith.constant dense<0.000000e+00> : vector<16x128xf32>
    %73 = tpu.matmul %65, %67, %cst_44 {dimension_numbers = #tpu.dot_dimension_numbers<[1], [0], [0], [1], [0, 0, 1, 1], [], []>} : vector<16x128xbf16>, vector<128x128xbf16>, vector<16x128xf32> -> vector<16x128xf32>
    %74 = vector.broadcast %69 : vector<1x128xf32> to vector<16x128xf32>
    %75 = arith.addf %73, %74 : vector<16x128xf32>
    %cst_45 = arith.constant dense<0xFF800000> : vector<16xf32>
    %76 = vector.multi_reduction <maximumf>, %72, %cst_45 [1] : vector<16x128xf32> to vector<16xf32>
    %77 = vector.shape_cast %76 : vector<16xf32> to vector<16x1xf32>
    %78 = vector.broadcast %77 : vector<16x1xf32> to vector<16x128xf32>
    %79 = arith.subf %72, %78 : vector<16x128xf32>
    %80 = math.exp %79 : vector<16x128xf32>
    %cst_46 = arith.constant dense<0.000000e+00> : vector<16xf32>
    %81 = vector.multi_reduction <add>, %80, %cst_46 [1] : vector<16x128xf32> to vector<16xf32>
    %82 = vector.shape_cast %81 : vector<16xf32> to vector<16x1xf32>
    %83 = math.log %82 : vector<16x1xf32>
    %84 = arith.addf %83, %77 : vector<16x1xf32>
    %85 = vector.broadcast %84 : vector<16x1xf32> to vector<16x128xf32>
    %86 = arith.subf %72, %85 : vector<16x128xf32>
    %c0_47 = arith.constant 0 : index
    %c0_48 = arith.constant 0 : index
    %87 = vector.load %arg4[%c0_47, %c0_48] : memref<32x128xf32, #tpu.memory_space<vmem>>, vector<16x128xf32>
    tpu.vector_store %arg4[%c0_47, %c0_48], %86 {strides = array<i32>} : memref<32x128xf32, #tpu.memory_space<vmem>>, vector<16x128xf32>,
    %cst_49 = arith.constant dense<0xFF800000> : vector<16xf32>
    %88 = vector.multi_reduction <maximumf>, %75, %cst_49 [1] : vector<16x128xf32> to vector<16xf32>
    %89 = vector.shape_cast %88 : vector<16xf32> to vector<16x1xf32>
    %90 = vector.broadcast %89 : vector<16x1xf32> to vector<16x128xf32>
    %91 = arith.subf %75, %90 : vector<16x128xf32>
    %92 = math.exp %91 : vector<16x128xf32>
    %cst_50 = arith.constant dense<0.000000e+00> : vector<16xf32>
    %93 = vector.multi_reduction <add>, %92, %cst_50 [1] : vector<16x128xf32> to vector<16xf32>
    %94 = vector.shape_cast %93 : vector<16xf32> to vector<16x1xf32>
    %95 = math.log %94 : vector<16x1xf32>
    %96 = arith.addf %95, %89 : vector<16x1xf32>
    %97 = vector.broadcast %96 : vector<16x1xf32> to vector<16x128xf32>
    %98 = arith.subf %75, %97 : vector<16x128xf32>
    %c16_51 = arith.constant 16 : index
    %c0_52 = arith.constant 0 : index
    %99 = vector.load %arg4[%c16_51, %c0_52] : memref<32x128xf32, #tpu.memory_space<vmem>>, vector<16x128xf32>
    tpu.vector_store %arg4[%c16_51, %c0_52], %98 {strides = array<i32>} : memref<32x128xf32, #tpu.memory_space<vmem>>, vector<16x128xf32>,
    return
  }
  func.func @transform_0(%arg0: i32) -> (i32, i32) {
    %c0_i32 = arith.constant 0 : i32
    %c0_i32_0 = arith.constant 0 : i32
    return %arg0, %c0_i32 : i32, i32
  }
  func.func @transform_1(%arg0: i32) -> (i32, i32, i32) {
    %c0_i32 = arith.constant 0 : i32
    %c0_i32_0 = arith.constant 0 : i32
    %c0_i32_1 = arith.constant 0 : i32
    %c0_i32_2 = arith.constant 0 : i32
    return %c0_i32, %c0_i32_0, %c0_i32_1 : i32, i32, i32
  }
  func.func @transform_2(%arg0: i32) -> (i32, i32, i32) {
    %c0_i32 = arith.constant 0 : i32
    %c0_i32_0 = arith.constant 0 : i32
    %c0_i32_1 = arith.constant 0 : i32
    %c0_i32_2 = arith.constant 0 : i32
    return %c0_i32, %c0_i32_0, %c0_i32_1 : i32, i32, i32
  }
  func.func @transform_3(%arg0: i32) -> (i32, i32) {
    %c0_i32 = arith.constant 0 : i32
    %c0_i32_0 = arith.constant 0 : i32
    return %arg0, %c0_i32 : i32, i32
  }
}

</mosaic_0001>

<llo_original>
// kernel: classifier_forward.1
$region0: #{classifier_forward.1}
  #allocation0 [shape = 'u32[]', space=smem, size = 0x4, offset = 0x4, fixed_abs, tag = 'smem constant byte address 0x4 - core index']
  #allocation1 [shape = 'u32[144,128]{1,0:T(1,128)}', space=vmem, size = 0x12000, scoped, tag = 'internal scratch']
  %s0 = inlined_call_operand.vmem [shape: bf16[32,128], index: 0, kind: input, shape index: {}]
  %s1 = inlined_call_operand.hbm [shape: bf16[5,128,128], index: 1, kind: input, shape index: {}]
  %s2 = inlined_call_operand.vmem [shape: f32[5,1,128], index: 2, kind: input, shape index: {}]
  %s3 = inlined_call_operand.vmem [shape: f32[32,128], index: 3, kind: output, shape index: {}]
  %s4 = sld [smem:[#allocation0]]
  $region26: #{classifier_forward.1} parent=0
    _
  %s6 = ssub.s32 1, %s4
  %s7 = scalar_select 0, %s6, %s4
  $region1: #{classifier_forward.1} parent=0
    #allocation2 [shape = 'u8[163840]{0}', space=vmem, size = 0x28000, scoped, tag = 'input window, operand 1, single buffered']
    #allocation3 [shape = 's32[1]{0}', space=sflag, size = 0x4, scoped, tag = 'scoped memory for classifier_forward.1']
    %8 = vsyncpa [#allocation3], 0
    // Predicated region
    $region2: #{classifier_forward.1} parent=1 // pred_check
      _
    $region3: #{classifier_forward.1} parent=1 // pred_check_branch
      %10 = sbr.rel (0) target = $region5
    $region4: #{classifier_forward.1} parent=1 // pred_region
      _
    $region5: #{classifier_forward.1} parent=1 // pred_fallthru
      _
    // Predicated region
    $region6: #{classifier_forward.1} parent=1 // pred_check
      _
    $region7: #{classifier_forward.1} parent=1 // pred_check_branch
      %12 = sbr.rel (0) target = $region9
    $region8: #{classifier_forward.1} parent=1 // pred_region
      %s14 = ssub.s32 5120, 5120
      %15 = vsyncadd [#allocation3], %s14
      %s16 = sshll.u32 [#allocation2], 4
      %s17 = int_to_ptr.vmem [resolvable:$true] %s16
      %22 = dma.hbm_to_vmem [thread:$0]  %s1, 5120, %s17, [#allocation3], 64, 64, 4
    $region9: #{classifier_forward.1} parent=1 // pred_fallthru
      _
    // Predicated region
    $region10: #{classifier_forward.1} parent=1 // pred_check
      _
    $region11: #{classifier_forward.1} parent=1 // pred_check_branch
      %24 = sbr.rel (0) target = $region13
    $region12: #{classifier_forward.1} parent=1 // pred_region
      _
    $region13: #{classifier_forward.1} parent=1 // pred_fallthru
      _
    // Predicated region
    $region14: #{classifier_forward.1} parent=1 // pred_check
      _
    $region15: #{classifier_forward.1} parent=1 // pred_check_branch
      %26 = sbr.rel (0) target = $region17
    $region16: #{classifier_forward.1} parent=1 // pred_region
      %27 = dma.done [#allocation3], 5120
    $region17: #{classifier_forward.1} parent=1 // pred_fallthru
      _
    %v29 = vld [vmem:[%s0] sm:$0xf]
    %v30 = vld [vmem:[%s0 + $0x4] sm:$0xf]
    %v31 = vld [vmem:[%s0 + $0x8] sm:$0xf]
    %v32 = vld [vmem:[%s0 + $0xc] sm:$0xf]
    %v33 = vld [vmem:[#allocation2] sm:$0xf]
    %v34 = vld [vmem:[#allocation2 + $0x4] sm:$0xf]
    %v35 = vld [vmem:[#allocation2 + $0x8] sm:$0xf]
    %v36 = vld [vmem:[#allocation2 + $0xc] sm:$0xf]
    %v37 = vld [vmem:[#allocation2 + $0x10] sm:$0xf]
    %v38 = vld [vmem:[#allocation2 + $0x14] sm:$0xf]
    %v39 = vld [vmem:[#allocation2 + $0x18] sm:$0xf]
    %v40 = vld [vmem:[#allocation2 + $0x1c] sm:$0xf]
    %v41 = vld [vmem:[#allocation2 + $0x20] sm:$0xf]
    %v42 = vld [vmem:[#allocation2 + $0x24] sm:$0xf]
    %v43 = vld [vmem:[#allocation2 + $0x28] sm:$0xf]
    %v44 = vld [vmem:[#allocation2 + $0x2c] sm:$0xf]
    %v45 = vld [vmem:[#allocation2 + $0x30] sm:$0xf]
    %v46 = vld [vmem:[#allocation2 + $0x34] sm:$0xf]
    %v47 = vld [vmem:[#allocation2 + $0x38] sm:$0xf]
    %v48 = vld [vmem:[#allocation2 + $0x3c] sm:$0xf]
    %v49 = vld [vmem:[%s2] sm:$0x1]
    %v51 = vlaneseq
    %v52 = vshrl.u32 %v51, 7
    %v53 = vsub.s32 0, %v52
    %v54 = vrot.slane %v49, %v53
    %v58 = vunpack.c.l.b16 %v29
    %v59 = vunpack.c.l.b16 %v30
    %v60 = vpack.c.b16 %v59, %v58
    %v78 = vunpack.c.l.b16 %v33
    %v79 = vunpack.c.l.b16 %v34
    %v80 = vunpack.c.l.b16 %v35
    %v81 = vunpack.c.l.b16 %v36
    %v82 = vunpack.c.l.b16 %v37
    %v83 = vunpack.c.l.b16 %v38
    %v84 = vunpack.c.l.b16 %v39
    %v85 = vunpack.c.l.b16 %v40
    %v86 = vunpack.c.l.b16 %v41
    %v87 = vunpack.c.l.b16 %v42
    %v88 = vunpack.c.l.b16 %v43
    %v89 = vunpack.c.l.b16 %v44
    %v90 = vunpack.c.l.b16 %v45
    %v91 = vunpack.c.l.b16 %v46
    %v92 = vunpack.c.l.b16 %v47
    %v93 = vunpack.c.l.b16 %v48
    %v94 = vpack.c.b16 %v79, %v78
    %v95 = vpack.c.b16 %v81, %v80
    %v96 = vpack.c.b16 %v83, %v82
    %v97 = vpack.c.b16 %v85, %v84
    %v98 = vpack.c.b16 %v87, %v86
    %v99 = vpack.c.b16 %v89, %v88
    %v100 = vpack.c.b16 %v91, %v90
    %v101 = vpack.c.b16 %v93, %v92
    %110 = vmatprep.subr.bf16.mxu0 0
    %111 = vmatpush1.bf16.msra.mxu0 %v94
    %112 = vmatprep.subr.bf16.mxu0 0
    %113 = vmatpush1.bf16.msra.mxu0 %v95
    %114 = vmatprep.subr.bf16.mxu0 0
    %115 = vmatpush1.bf16.msra.mxu0 %v96
    %116 = vmatprep.subr.bf16.mxu0 0
    %117 = vmatpush1.bf16.msra.mxu0 %v97
    %118 = vmatprep.subr.bf16.mxu0 0
    %119 = vmatpush1.bf16.msra.mxu0 %v98
    %120 = vmatprep.subr.bf16.mxu0 0
    %121 = vmatpush1.bf16.msra.mxu0 %v99
    %122 = vmatprep.subr.bf16.mxu0 0
    %123 = vmatpush1.bf16.msra.mxu0 %v100
    %124 = vmatprep.subr.bf16.mxu0 0
    %125 = vmatpush1.bf16.msra.mxu0 %v101
    %126 = vmatprep.subr.bf16.mxu0 0
    %127 = vmatpush1.bf16.msra.mxu0 0
    %128 = vmatprep.subr.bf16.mxu0 0
    %129 = vmatpush1.bf16.msra.mxu0 0
    %130 = vmatprep.subr.bf16.mxu0 0
    %131 = vmatpush1.bf16.msra.mxu0 0
    %132 = vmatprep.subr.bf16.mxu0 0
    %133 = vmatpush1.bf16.msra.mxu0 0
    %134 = vmatprep.subr.bf16.mxu0 0
    %135 = vmatpush1.bf16.msra.mxu0 0
    %136 = vmatprep.subr.bf16.mxu0 0
    %137 = vmatpush1.bf16.msra.mxu0 0
    %138 = vmatprep.subr.bf16.mxu0 0
    %139 = vmatpush1.bf16.msra.mxu0 0
    %140 = vmatprep.subr.bf16.mxu0 0
    %141 = vmatpush1.bf16.msra.mxu0 0
    %142 = vmatprep.mubr.bf16.mxu0 0
    %143 = vmatmul.mubr.bf16.gmra.mrb[0].mxu0 %v60
    %v144 = vpop.f32.mrb[0].mxu0
    %v145 = vadd.f32 %v54, %v144
    %v146 = vpop.f32.mrb[0].mxu0
    %v147 = vpop.f32.mrb[0].mxu0
    %v148 = vadd.f32 %v54, %v147
    %v149 = vpop.f32.mrb[0].mxu0
    %150 = vdwg.mxu0
    %v151 = vmax.f32 %v145, 0.0
    %v152 = vmax.f32 %v148, 0.0
    %v153 = vpack.c.bf16 %v152, %v151
    %v156 = vunpack.c.l.b16 %v31
    %v157 = vunpack.c.l.b16 %v32
    %v158 = vpack.c.b16 %v157, %v156
    %160 = vmatprep.subr.bf16.mxu0 0
    %161 = vmatpush1.bf16.msra.mxu0 %v94
    %162 = vmatprep.subr.bf16.mxu0 0
    %163 = vmatpush1.bf16.msra.mxu0 %v95
    %164 = vmatprep.subr.bf16.mxu0 0
    %165 = vmatpush1.bf16.msra.mxu0 %v96
    %166 = vmatprep.subr.bf16.mxu0 0
    %167 = vmatpush1.bf16.msra.mxu0 %v97
    %168 = vmatprep.subr.bf16.mxu0 0
    %169 = vmatpush1.bf16.msra.mxu0 %v98
    %170 = vmatprep.subr.bf16.mxu0 0
    %171 = vmatpush1.bf16.msra.mxu0 %v99
    %172 = vmatprep.subr.bf16.mxu0 0
    %173 = vmatpush1.bf16.msra.mxu0 %v100
    %174 = vmatprep.subr.bf16.mxu0 0
    %175 = vmatpush1.bf16.msra.mxu0 %v101
    %176 = vmatprep.subr.bf16.mxu0 0
    %177 = vmatpush1.bf16.msra.mxu0 0
    %178 = vmatprep.subr.bf16.mxu0 0
    %179 = vmatpush1.bf16.msra.mxu0 0
    %180 = vmatprep.subr.bf16.mxu0 0
    %181 = vmatpush1.bf16.msra.mxu0 0
    %182 = vmatprep.subr.bf16.mxu0 0
    %183 = vmatpush1.bf16.msra.mxu0 0
    %184 = vmatprep.subr.bf16.mxu0 0
    %185 = vmatpush1.bf16.msra.mxu0 0
    %186 = vmatprep.subr.bf16.mxu0 0
    %187 = vmatpush1.bf16.msra.mxu0 0
    %188 = vmatprep.subr.bf16.mxu0 0
    %189 = vmatpush1.bf16.msra.mxu0 0
    %190 = vmatprep.subr.bf16.mxu0 0
    %191 = vmatpush1.bf16.msra.mxu0 0
    %192 = vmatprep.mubr.bf16.mxu0 0
    %193 = vmatmul.mubr.bf16.gmra.mrb[0].mxu0 %v158
    %v194 = vpop.f32.mrb[0].mxu0
    %v195 = vadd.f32 %v54, %v194
    %v196 = vpop.f32.mrb[0].mxu0
    %v197 = vpop.f32.mrb[0].mxu0
    %v198 = vadd.f32 %v54, %v197
    %v199 = vpop.f32.mrb[0].mxu0
    %200 = vdwg.mxu0
    %v201 = vmax.f32 %v195, 0.0
    %v202 = vmax.f32 %v198, 0.0
    %v203 = vpack.c.bf16 %v202, %v201
    %s204 = scalar_lea.vmem [#allocation2], 64
    %v205 = vld [vmem:[%s204] sm:$0xf]
    %v206 = vld [vmem:[%s204 + $0x4] sm:$0xf]
    %v207 = vld [vmem:[%s204 + $0x8] sm:$0xf]
    %v208 = vld [vmem:[%s204 + $0xc] sm:$0xf]
    %v209 = vld [vmem:[%s204 + $0x10] sm:$0xf]
    %v210 = vld [vmem:[%s204 + $0x14] sm:$0xf]
    %v211 = vld [vmem:[%s204 + $0x18] sm:$0xf]
    %v212 = vld [vmem:[%s204 + $0x1c] sm:$0xf]
    %v213 = vld [vmem:[%s204 + $0x20] sm:$0xf]
    %v214 = vld [vmem:[%s204 + $0x24] sm:$0xf]
    %v215 = vld [vmem:[%s204 + $0x28] sm:$0xf]
    %v216 = vld [vmem:[%s204 + $0x2c] sm:$0xf]
    %v217 = vld [vmem:[%s204 + $0x30] sm:$0xf]
    %v218 = vld [vmem:[%s204 + $0x34] sm:$0xf]
    %v219 = vld [vmem:[%s204 + $0x38] sm:$0xf]
    %v220 = vld [vmem:[%s204 + $0x3c] sm:$0xf]
    %s221 = scalar_lea.vmem %s2, 1
    %v222 = vld [vmem:[%s221] sm:$0x1]
    %v224 = vlaneseq
    %v225 = vshrl.u32 %v224, 7
    %v226 = vsub.s32 0, %v225
    %v227 = vrot.slane %v222, %v226
    %v245 = vunpack.c.l.b16 %v205
    %v246 = vunpack.c.l.b16 %v206
    %v247 = vunpack.c.l.b16 %v207
    %v248 = vunpack.c.l.b16 %v208
    %v249 = vunpack.c.l.b16 %v209
    %v250 = vunpack.c.l.b16 %v210
    %v251 = vunpack.c.l.b16 %v211
    %v252 = vunpack.c.l.b16 %v212
    %v253 = vunpack.c.l.b16 %v213
    %v254 = vunpack.c.l.b16 %v214
    %v255 = vunpack.c.l.b16 %v215
    %v256 = vunpack.c.l.b16 %v216
    %v257 = vunpack.c.l.b16 %v217
    %v258 = vunpack.c.l.b16 %v218
    %v259 = vunpack.c.l.b16 %v219
    %v260 = vunpack.c.l.b16 %v220
    %v261 = vpack.c.b16 %v246, %v245
    %v262 = vpack.c.b16 %v248, %v247
    %v263 = vpack.c.b16 %v250, %v249
    %v264 = vpack.c.b16 %v252, %v251
    %v265 = vpack.c.b16 %v254, %v253
    %v266 = vpack.c.b16 %v256, %v255
    %v267 = vpack.c.b16 %v258, %v257
    %v268 = vpack.c.b16 %v260, %v259
    %277 = vmatprep.subr.bf16.mxu0 0
    %278 = vmatpush1.bf16.msra.mxu0 %v261
    %279 = vmatprep.subr.bf16.mxu0 0
    %280 = vmatpush1.bf16.msra.mxu0 %v262
    %281 = vmatprep.subr.bf16.mxu0 0
    %282 = vmatpush1.bf16.msra.mxu0 %v263
    %283 = vmatprep.subr.bf16.mxu0 0
    %284 = vmatpush1.bf16.msra.mxu0 %v264
    %285 = vmatprep.subr.bf16.mxu0 0
    %286 = vmatpush1.bf16.msra.mxu0 %v265
    %287 = vmatprep.subr.bf16.mxu0 0
    %288 = vmatpush1.bf16.msra.mxu0 %v266
    %289 = vmatprep.subr.bf16.mxu0 0
    %290 = vmatpush1.bf16.msra.mxu0 %v267
    %291 = vmatprep.subr.bf16.mxu0 0
    %292 = vmatpush1.bf16.msra.mxu0 %v268
    %293 = vmatprep.subr.bf16.mxu0 0
    %294 = vmatpush1.bf16.msra.mxu0 0
    %295 = vmatprep.subr.bf16.mxu0 0
    %296 = vmatpush1.bf16.msra.mxu0 0
    %297 = vmatprep.subr.bf16.mxu0 0
    %298 = vmatpush1.bf16.msra.mxu0 0
    %299 = vmatprep.subr.bf16.mxu0 0
    %300 = vmatpush1.bf16.msra.mxu0 0
    %301 = vmatprep.subr.bf16.mxu0 0
    %302 = vmatpush1.bf16.msra.mxu0 0
    %303 = vmatprep.subr.bf16.mxu0 0
    %304 = vmatpush1.bf16.msra.mxu0 0
    %305 = vmatprep.subr.bf16.mxu0 0
    %306 = vmatpush1.bf16.msra.mxu0 0
    %307 = vmatprep.subr.bf16.mxu0 0
    %308 = vmatpush1.bf16.msra.mxu0 0
    %309 = vmatprep.mubr.bf16.mxu0 0
    %310 = vmatmul.mubr.bf16.gmra.mrb[0].mxu0 %v153
    %v311 = vpop.f32.mrb[0].mxu0
    %v312 = vadd.f32 %v227, %v311
    %v313 = vpop.f32.mrb[0].mxu0
    %v314 = vpop.f32.mrb[0].mxu0
    %v315 = vadd.f32 %v227, %v314
    %v316 = vpop.f32.mrb[0].mxu0
    %317 = vdwg.mxu0
    %v318 = vmax.f32 %v312, 0.0
    %v319 = vmax.f32 %v315, 0.0
    %v320 = vpack.c.bf16 %v319, %v318
    %321 = vmatprep.subr.bf16.mxu0 0
    %322 = vmatpush1.bf16.msra.mxu0 %v261
    %323 = vmatprep.subr.bf16.mxu0 0
    %324 = vmatpush1.bf16.msra.mxu0 %v262
    %325 = vmatprep.subr.bf16.mxu0 0
    %326 = vmatpush1.bf16.msra.mxu0 %v263
    %327 = vmatprep.subr.bf16.mxu0 0
    %328 = vmatpush1.bf16.msra.mxu0 %v264
    %329 = vmatprep.subr.bf16.mxu0 0
    %330 = vmatpush1.bf16.msra.mxu0 %v265
    %331 = vmatprep.subr.bf16.mxu0 0
    %332 = vmatpush1.bf16.msra.mxu0 %v266
    %333 = vmatprep.subr.bf16.mxu0 0
    %334 = vmatpush1.bf16.msra.mxu0 %v267
    %335 = vmatprep.subr.bf16.mxu0 0
    %336 = vmatpush1.bf16.msra.mxu0 %v268
    %337 = vmatprep.subr.bf16.mxu0 0
    %338 = vmatpush1.bf16.msra.mxu0 0
    %339 = vmatprep.subr.bf16.mxu0 0
    %340 = vmatpush1.bf16.msra.mxu0 0
    %341 = vmatprep.subr.bf16.mxu0 0
    %342 = vmatpush1.bf16.msra.mxu0 0
    %343 = vmatprep.subr.bf16.mxu0 0
    %344 = vmatpush1.bf16.msra.mxu0 0
    %345 = vmatprep.subr.bf16.mxu0 0
    %346 = vmatpush1.bf16.msra.mxu0 0
    %347 = vmatprep.subr.bf16.mxu0 0
    %348 = vmatpush1.bf16.msra.mxu0 0
    %349 = vmatprep.subr.bf16.mxu0 0
    %350 = vmatpush1.bf16.msra.mxu0 0
    %351 = vmatprep.subr.bf16.mxu0 0
    %352 = vmatpush1.bf16.msra.mxu0 0
    %353 = vmatprep.mubr.bf16.mxu0 0
    %354 = vmatmul.mubr.bf16.gmra.mrb[0].mxu0 %v203
    %v355 = vpop.f32.mrb[0].mxu0
    %v356 = vadd.f32 %v227, %v355
    %v357 = vpop.f32.mrb[0].mxu0
    %v358 = vpop.f32.mrb[0].mxu0
    %v359 = vadd.f32 %v227, %v358
    %v360 = vpop.f32.mrb[0].mxu0
    %361 = vdwg.mxu0
    %v362 = vmax.f32 %v356, 0.0
    %v363 = vmax.f32 %v359, 0.0
    %v364 = vpack.c.bf16 %v363, %v362
    %s365 = scalar_lea.vmem [#allocation2], 128
    %v366 = vld [vmem:[%s365] sm:$0xf]
    %v367 = vld [vmem:[%s365 + $0x4] sm:$0xf]
    %v368 = vld [vmem:[%s365 + $0x8] sm:$0xf]
    %v369 = vld [vmem:[%s365 + $0xc] sm:$0xf]
    %v370 = vld [vmem:[%s365 + $0x10] sm:$0xf]
    %v371 = vld [vmem:[%s365 + $0x14] sm:$0xf]
    %v372 = vld [vmem:[%s365 + $0x18] sm:$0xf]
    %v373 = vld [vmem:[%s365 + $0x1c] sm:$0xf]
    %v374 = vld [vmem:[%s365 + $0x20] sm:$0xf]
    %v375 = vld [vmem:[%s365 + $0x24] sm:$0xf]
    %v376 = vld [vmem:[%s365 + $0x28] sm:$0xf]
    %v377 = vld [vmem:[%s365 + $0x2c] sm:$0xf]
    %v378 = vld [vmem:[%s365 + $0x30] sm:$0xf]
    %v379 = vld [vmem:[%s365 + $0x34] sm:$0xf]
    %v380 = vld [vmem:[%s365 + $0x38] sm:$0xf]
    %v381 = vld [vmem:[%s365 + $0x3c] sm:$0xf]
    %s382 = scalar_lea.vmem %s2, 2
    %v383 = vld [vmem:[%s382] sm:$0x1]
    %v385 = vlaneseq
    %v386 = vshrl.u32 %v385, 7
    %v387 = vsub.s32 0, %v386
    %v388 = vrot.slane %v383, %v387
    %v406 = vunpack.c.l.b16 %v366
    %v407 = vunpack.c.l.b16 %v367
    %v408 = vunpack.c.l.b16 %v368
    %v409 = vunpack.c.l.b16 %v369
    %v410 = vunpack.c.l.b16 %v370
    %v411 = vunpack.c.l.b16 %v371
    %v412 = vunpack.c.l.b16 %v372
    %v413 = vunpack.c.l.b16 %v373
    %v414 = vunpack.c.l.b16 %v374
    %v415 = vunpack.c.l.b16 %v375
    %v416 = vunpack.c.l.b16 %v376
    %v417 = vunpack.c.l.b16 %v377
    %v418 = vunpack.c.l.b16 %v378
    %v419 = vunpack.c.l.b16 %v379
    %v420 = vunpack.c.l.b16 %v380
    %v421 = vunpack.c.l.b16 %v381
    %v422 = vpack.c.b16 %v407, %v406
    %v423 = vpack.c.b16 %v409, %v408
    %v424 = vpack.c.b16 %v411, %v410
    %v425 = vpack.c.b16 %v413, %v412
    %v426 = vpack.c.b16 %v415, %v414
    %v427 = vpack.c.b16 %v417, %v416
    %v428 = vpack.c.b16 %v419, %v418
    %v429 = vpack.c.b16 %v421, %v420
    %438 = vmatprep.subr.bf16.mxu0 0
    %439 = vmatpush1.bf16.msra.mxu0 %v422
    %440 = vmatprep.subr.bf16.mxu0 0
    %441 = vmatpush1.bf16.msra.mxu0 %v423
    %442 = vmatprep.subr.bf16.mxu0 0
    %443 = vmatpush1.bf16.msra.mxu0 %v424
    %444 = vmatprep.subr.bf16.mxu0 0
    %445 = vmatpush1.bf16.msra.mxu0 %v425
    %446 = vmatprep.subr.bf16.mxu0 0
    %447 = vmatpush1.bf16.msra.mxu0 %v426
    %448 = vmatprep.subr.bf16.mxu0 0
    %449 = vmatpush1.bf16.msra.mxu0 %v427
    %450 = vmatprep.subr.bf16.mxu0 0
    %451 = vmatpush1.bf16.msra.mxu0 %v428
    %452 = vmatprep.subr.bf16.mxu0 0
    %453 = vmatpush1.bf16.msra.mxu0 %v429
    %454 = vmatprep.subr.bf16.mxu0 0
    %455 = vmatpush1.bf16.msra.mxu0 0
    %456 = vmatprep.subr.bf16.mxu0 0
    %457 = vmatpush1.bf16.msra.mxu0 0
    %458 = vmatprep.subr.bf16.mxu0 0
    %459 = vmatpush1.bf16.msra.mxu0 0
    %460 = vmatprep.subr.bf16.mxu0 0
    %461 = vmatpush1.bf16.msra.mxu0 0
    %462 = vmatprep.subr.bf16.mxu0 0
    %463 = vmatpush1.bf16.msra.mxu0 0
    %464 = vmatprep.subr.bf16.mxu0 0
    %465 = vmatpush1.bf16.msra.mxu0 0
    %466 = vmatprep.subr.bf16.mxu0 0
    %467 = vmatpush1.bf16.msra.mxu0 0
    %468 = vmatprep.subr.bf16.mxu0 0
    %469 = vmatpush1.bf16.msra.mxu0 0
    %470 = vmatprep.mubr.bf16.mxu0 0
    %471 = vmatmul.mubr.bf16.gmra.mrb[0].mxu0 %v320
    %v472 = vpop.f32.mrb[0].mxu0
    %v473 = vadd.f32 %v388, %v472
    %v474 = vpop.f32.mrb[0].mxu0
    %v475 = vpop.f32.mrb[0].mxu0
    %v476 = vadd.f32 %v388, %v475
    %v477 = vpop.f32.mrb[0].mxu0
    %478 = vdwg.mxu0
    %v479 = vmax.f32 %v473, 0.0
    %v480 = vmax.f32 %v476, 0.0
    %v481 = vpack.c.bf16 %v480, %v479
    %482 = vmatprep.subr.bf16.mxu0 0
    %483 = vmatpush1.bf16.msra.mxu0 %v422
    %484 = vmatprep.subr.bf16.mxu0 0
    %485 = vmatpush1.bf16.msra.mxu0 %v423
    %486 = vmatprep.subr.bf16.mxu0 0
    %487 = vmatpush1.bf16.msra.mxu0 %v424
    %488 = vmatprep.subr.bf16.mxu0 0
    %489 = vmatpush1.bf16.msra.mxu0 %v425
    %490 = vmatprep.subr.bf16.mxu0 0
    %491 = vmatpush1.bf16.msra.mxu0 %v426
    %492 = vmatprep.subr.bf16.mxu0 0
    %493 = vmatpush1.bf16.msra.mxu0 %v427
    %494 = vmatprep.subr.bf16.mxu0 0
    %495 = vmatpush1.bf16.msra.mxu0 %v428
    %496 = vmatprep.subr.bf16.mxu0 0
    %497 = vmatpush1.bf16.msra.mxu0 %v429
    %498 = vmatprep.subr.bf16.mxu0 0
    %499 = vmatpush1.bf16.msra.mxu0 0
    %500 = vmatprep.subr.bf16.mxu0 0
    %501 = vmatpush1.bf16.msra.mxu0 0
    %502 = vmatprep.subr.bf16.mxu0 0
    %503 = vmatpush1.bf16.msra.mxu0 0
    %504 = vmatprep.subr.bf16.mxu0 0
    %505 = vmatpush1.bf16.msra.mxu0 0
    %506 = vmatprep.subr.bf16.mxu0 0
    %507 = vmatpush1.bf16.msra.mxu0 0
    %508 = vmatprep.subr.bf16.mxu0 0
    %509 = vmatpush1.bf16.msra.mxu0 0
    %510 = vmatprep.subr.bf16.mxu0 0
    %511 = vmatpush1.bf16.msra.mxu0 0
    %512 = vmatprep.subr.bf16.mxu0 0
    %513 = vmatpush1.bf16.msra.mxu0 0
    %514 = vmatprep.mubr.bf16.mxu0 0
    %515 = vmatmul.mubr.bf16.gmra.mrb[0].mxu0 %v364
    %v516 = vpop.f32.mrb[0].mxu0
    %v517 = vadd.f32 %v388, %v516
    %v518 = vpop.f32.mrb[0].mxu0
    %v519 = vpop.f32.mrb[0].mxu0
    %v520 = vadd.f32 %v388, %v519
    %v521 = vpop.f32.mrb[0].mxu0
    %522 = vdwg.mxu0
    %v523 = vmax.f32 %v517, 0.0
    %v524 = vmax.f32 %v520, 0.0
    %v525 = vpack.c.bf16 %v524, %v523
    %s526 = scalar_lea.vmem [#allocation2], 192
    %v527 = vld [vmem:[%s526] sm:$0xf]
    %v528 = vld [vmem:[%s526 + $0x4] sm:$0xf]
    %v529 = vld [vmem:[%s526 + $0x8] sm:$0xf]
    %v530 = vld [vmem:[%s526 + $0xc] sm:$0xf]
    %v531 = vld [vmem:[%s526 + $0x10] sm:$0xf]
    %v532 = vld [vmem:[%s526 + $0x14] sm:$0xf]
    %v533 = vld [vmem:[%s526 + $0x18] sm:$0xf]
    %v534 = vld [vmem:[%s526 + $0x1c] sm:$0xf]
    %v535 = vld [vmem:[%s526 + $0x20] sm:$0xf]
    %v536 = vld [vmem:[%s526 + $0x24] sm:$0xf]
    %v537 = vld [vmem:[%s526 + $0x28] sm:$0xf]
    %v538 = vld [vmem:[%s526 + $0x2c] sm:$0xf]
    %v539 = vld [vmem:[%s526 + $0x30] sm:$0xf]
    %v540 = vld [vmem:[%s526 + $0x34] sm:$0xf]
    %v541 = vld [vmem:[%s526 + $0x38] sm:$0xf]
    %v542 = vld [vmem:[%s526 + $0x3c] sm:$0xf]
    %s543 = scalar_lea.vmem %s2, 3
    %v544 = vld [vmem:[%s543] sm:$0x1]
    %v546 = vlaneseq
    %v547 = vshrl.u32 %v546, 7
    %v548 = vsub.s32 0, %v547
    %v549 = vrot.slane %v544, %v548
    %v567 = vunpack.c.l.b16 %v527
    %v568 = vunpack.c.l.b16 %v528
    %v569 = vunpack.c.l.b16 %v529
    %v570 = vunpack.c.l.b16 %v530
    %v571 = vunpack.c.l.b16 %v531
    %v572 = vunpack.c.l.b16 %v532
    %v573 = vunpack.c.l.b16 %v533
    %v574 = vunpack.c.l.b16 %v534
    %v575 = vunpack.c.l.b16 %v535
    %v576 = vunpack.c.l.b16 %v536
    %v577 = vunpack.c.l.b16 %v537
    %v578 = vunpack.c.l.b16 %v538
    %v579 = vunpack.c.l.b16 %v539
    %v580 = vunpack.c.l.b16 %v540
    %v581 = vunpack.c.l.b16 %v541
    %v582 = vunpack.c.l.b16 %v542
    %v583 = vpack.c.b16 %v568, %v567
    %v584 = vpack.c.b16 %v570, %v569
    %v585 = vpack.c.b16 %v572, %v571
    %v586 = vpack.c.b16 %v574, %v573
    %v587 = vpack.c.b16 %v576, %v575
    %v588 = vpack.c.b16 %v578, %v577
    %v589 = vpack.c.b16 %v580, %v579
    %v590 = vpack.c.b16 %v582, %v581
    %599 = vmatprep.subr.bf16.mxu0 0
    %600 = vmatpush1.bf16.msra.mxu0 %v583
    %601 = vmatprep.subr.bf16.mxu0 0
    %602 = vmatpush1.bf16.msra.mxu0 %v584
    %603 = vmatprep.subr.bf16.mxu0 0
    %604 = vmatpush1.bf16.msra.mxu0 %v585
    %605 = vmatprep.subr.bf16.mxu0 0
    %606 = vmatpush1.bf16.msra.mxu0 %v586
    %607 = vmatprep.subr.bf16.mxu0 0
    %608 = vmatpush1.bf16.msra.mxu0 %v587
    %609 = vmatprep.subr.bf16.mxu0 0
    %610 = vmatpush1.bf16.msra.mxu0 %v588
    %611 = vmatprep.subr.bf16.mxu0 0
    %612 = vmatpush1.bf16.msra.mxu0 %v589
    %613 = vmatprep.subr.bf16.mxu0 0
    %614 = vmatpush1.bf16.msra.mxu0 %v590
    %615 = vmatprep.subr.bf16.mxu0 0
    %616 = vmatpush1.bf16.msra.mxu0 0
    %617 = vmatprep.subr.bf16.mxu0 0
    %618 = vmatpush1.bf16.msra.mxu0 0
    %619 = vmatprep.subr.bf16.mxu0 0
    %620 = vmatpush1.bf16.msra.mxu0 0
    %621 = vmatprep.subr.bf16.mxu0 0
    %622 = vmatpush1.bf16.msra.mxu0 0
    %623 = vmatprep.subr.bf16.mxu0 0
    %624 = vmatpush1.bf16.msra.mxu0 0
    %625 = vmatprep.subr.bf16.mxu0 0
    %626 = vmatpush1.bf16.msra.mxu0 0
    %627 = vmatprep.subr.bf16.mxu0 0
    %628 = vmatpush1.bf16.msra.mxu0 0
    %629 = vmatprep.subr.bf16.mxu0 0
    %630 = vmatpush1.bf16.msra.mxu0 0
    %631 = vmatprep.mubr.bf16.mxu0 0
    %632 = vmatmul.mubr.bf16.gmra.mrb[0].mxu0 %v481
    %v633 = vpop.f32.mrb[0].mxu0
    %v634 = vadd.f32 %v549, %v633
    %v635 = vpop.f32.mrb[0].mxu0
    %v636 = vpop.f32.mrb[0].mxu0
    %v637 = vadd.f32 %v549, %v636
    %v638 = vpop.f32.mrb[0].mxu0
    %639 = vdwg.mxu0
    %v640 = vmax.f32 %v634, 0.0
    %v641 = vmax.f32 %v637, 0.0
    %v642 = vpack.c.bf16 %v641, %v640
    %643 = vmatprep.subr.bf16.mxu0 0
    %644 = vmatpush1.bf16.msra.mxu0 %v583
    %645 = vmatprep.subr.bf16.mxu0 0
    %646 = vmatpush1.bf16.msra.mxu0 %v584
    %647 = vmatprep.subr.bf16.mxu0 0
    %648 = vmatpush1.bf16.msra.mxu0 %v585
    %649 = vmatprep.subr.bf16.mxu0 0
    %650 = vmatpush1.bf16.msra.mxu0 %v586
    %651 = vmatprep.subr.bf16.mxu0 0
    %652 = vmatpush1.bf16.msra.mxu0 %v587
    %653 = vmatprep.subr.bf16.mxu0 0
    %654 = vmatpush1.bf16.msra.mxu0 %v588
    %655 = vmatprep.subr.bf16.mxu0 0
    %656 = vmatpush1.bf16.msra.mxu0 %v589
    %657 = vmatprep.subr.bf16.mxu0 0
    %658 = vmatpush1.bf16.msra.mxu0 %v590
    %659 = vmatprep.subr.bf16.mxu0 0
    %660 = vmatpush1.bf16.msra.mxu0 0
    %661 = vmatprep.subr.bf16.mxu0 0
    %662 = vmatpush1.bf16.msra.mxu0 0
    %663 = vmatprep.subr.bf16.mxu0 0
    %664 = vmatpush1.bf16.msra.mxu0 0
    %665 = vmatprep.subr.bf16.mxu0 0
    %666 = vmatpush1.bf16.msra.mxu0 0
    %667 = vmatprep.subr.bf16.mxu0 0
    %668 = vmatpush1.bf16.msra.mxu0 0
    %669 = vmatprep.subr.bf16.mxu0 0
    %670 = vmatpush1.bf16.msra.mxu0 0
    %671 = vmatprep.subr.bf16.mxu0 0
    %672 = vmatpush1.bf16.msra.mxu0 0
    %673 = vmatprep.subr.bf16.mxu0 0
    %674 = vmatpush1.bf16.msra.mxu0 0
    %675 = vmatprep.mubr.bf16.mxu0 0
    %676 = vmatmul.mubr.bf16.gmra.mrb[0].mxu0 %v525
    %v677 = vpop.f32.mrb[0].mxu0
    %v678 = vadd.f32 %v549, %v677
    %v679 = vpop.f32.mrb[0].mxu0
    %v680 = vpop.f32.mrb[0].mxu0
    %v681 = vadd.f32 %v549, %v680
    %v682 = vpop.f32.mrb[0].mxu0
    %683 = vdwg.mxu0
    %v684 = vmax.f32 %v678, 0.0
    %v685 = vmax.f32 %v681, 0.0
    %v686 = vpack.c.bf16 %v685, %v684
    %s687 = scalar_lea.vmem [#allocation2], 256
    %v688 = vld [vmem:[%s687] sm:$0xf]
    %v689 = vld [vmem:[%s687 + $0x4] sm:$0xf]
    %v690 = vld [vmem:[%s687 + $0x8] sm:$0xf]
    %v691 = vld [vmem:[%s687 + $0xc] sm:$0xf]
    %v692 = vld [vmem:[%s687 + $0x10] sm:$0xf]
    %v693 = vld [vmem:[%s687 + $0x14] sm:$0xf]
    %v694 = vld [vmem:[%s687 + $0x18] sm:$0xf]
    %v695 = vld [vmem:[%s687 + $0x1c] sm:$0xf]
    %v696 = vld [vmem:[%s687 + $0x20] sm:$0xf]
    %v697 = vld [vmem:[%s687 + $0x24] sm:$0xf]
    %v698 = vld [vmem:[%s687 + $0x28] sm:$0xf]
    %v699 = vld [vmem:[%s687 + $0x2c] sm:$0xf]
    %v700 = vld [vmem:[%s687 + $0x30] sm:$0xf]
    %v701 = vld [vmem:[%s687 + $0x34] sm:$0xf]
    %v702 = vld [vmem:[%s687 + $0x38] sm:$0xf]
    %v703 = vld [vmem:[%s687 + $0x3c] sm:$0xf]
    %s704 = scalar_lea.vmem %s2, 4
    %v705 = vld [vmem:[%s704] sm:$0x1]
    %v707 = vlaneseq
    %v708 = vshrl.u32 %v707, 7
    %v709 = vsub.s32 0, %v708
    %v710 = vrot.slane %v705, %v709
    %v728 = vunpack.c.l.b16 %v688
    %v729 = vunpack.c.l.b16 %v689
    %v730 = vunpack.c.l.b16 %v690
    %v731 = vunpack.c.l.b16 %v691
    %v732 = vunpack.c.l.b16 %v692
    %v733 = vunpack.c.l.b16 %v693
    %v734 = vunpack.c.l.b16 %v694
    %v735 = vunpack.c.l.b16 %v695
    %v736 = vunpack.c.l.b16 %v696
    %v737 = vunpack.c.l.b16 %v697
    %v738 = vunpack.c.l.b16 %v698
    %v739 = vunpack.c.l.b16 %v699
    %v740 = vunpack.c.l.b16 %v700
    %v741 = vunpack.c.l.b16 %v701
    %v742 = vunpack.c.l.b16 %v702
    %v743 = vunpack.c.l.b16 %v703
    %v744 = vpack.c.b16 %v729, %v728
    %v745 = vpack.c.b16 %v731, %v730
    %v746 = vpack.c.b16 %v733, %v732
    %v747 = vpack.c.b16 %v735, %v734
    %v748 = vpack.c.b16 %v737, %v736
    %v749 = vpack.c.b16 %v739, %v738
    %v750 = vpack.c.b16 %v741, %v740
    %v751 = vpack.c.b16 %v743, %v742
    %760 = vmatprep.subr.bf16.mxu0 0
    %761 = vmatpush1.bf16.msra.mxu0 %v744
    %762 = vmatprep.subr.bf16.mxu0 0
    %763 = vmatpush1.bf16.msra.mxu0 %v745
    %764 = vmatprep.subr.bf16.mxu0 0
    %765 = vmatpush1.bf16.msra.mxu0 %v746
    %766 = vmatprep.subr.bf16.mxu0 0
    %767 = vmatpush1.bf16.msra.mxu0 %v747
    %768 = vmatprep.subr.bf16.mxu0 0
    %769 = vmatpush1.bf16.msra.mxu0 %v748
    %770 = vmatprep.subr.bf16.mxu0 0
    %771 = vmatpush1.bf16.msra.mxu0 %v749
    %772 = vmatprep.subr.bf16.mxu0 0
    %773 = vmatpush1.bf16.msra.mxu0 %v750
    %774 = vmatprep.subr.bf16.mxu0 0
    %775 = vmatpush1.bf16.msra.mxu0 %v751
    %776 = vmatprep.subr.bf16.mxu0 0
    %777 = vmatpush1.bf16.msra.mxu0 0
    %778 = vmatprep.subr.bf16.mxu0 0
    %779 = vmatpush1.bf16.msra.mxu0 0
    %780 = vmatprep.subr.bf16.mxu0 0
    %781 = vmatpush1.bf16.msra.mxu0 0
    %782 = vmatprep.subr.bf16.mxu0 0
    %783 = vmatpush1.bf16.msra.mxu0 0
    %784 = vmatprep.subr.bf16.mxu0 0
    %785 = vmatpush1.bf16.msra.mxu0 0
    %786 = vmatprep.subr.bf16.mxu0 0
    %787 = vmatpush1.bf16.msra.mxu0 0
    %788 = vmatprep.subr.bf16.mxu0 0
    %789 = vmatpush1.bf16.msra.mxu0 0
    %790 = vmatprep.subr.bf16.mxu0 0
    %791 = vmatpush1.bf16.msra.mxu0 0
    %792 = vmatprep.mubr.bf16.mxu0 0
    %793 = vmatmul.mubr.bf16.gmra.mrb[0].mxu0 %v642
    %v794 = vpop.f32.mrb[0].mxu0
    %v795 = vadd.f32 %v710, %v794
    %v796 = vpop.f32.mrb[0].mxu0
    %v797 = vpop.f32.mrb[0].mxu0
    %v798 = vadd.f32 %v710, %v797
    %v799 = vpop.f32.mrb[0].mxu0
    %800 = vdwg.mxu0
    %801 = vmatprep.subr.bf16.mxu0 0
    %802 = vmatpush1.bf16.msra.mxu0 %v744
    %803 = vmatprep.subr.bf16.mxu0 0
    %804 = vmatpush1.bf16.msra.mxu0 %v745
    %805 = vmatprep.subr.bf16.mxu0 0
    %806 = vmatpush1.bf16.msra.mxu0 %v746
    %807 = vmatprep.subr.bf16.mxu0 0
    %808 = vmatpush1.bf16.msra.mxu0 %v747
    %809 = vmatprep.subr.bf16.mxu0 0
    %810 = vmatpush1.bf16.msra.mxu0 %v748
    %811 = vmatprep.subr.bf16.mxu0 0
    %812 = vmatpush1.bf16.msra.mxu0 %v749
    %813 = vmatprep.subr.bf16.mxu0 0
    %814 = vmatpush1.bf16.msra.mxu0 %v750
    %815 = vmatprep.subr.bf16.mxu0 0
    %816 = vmatpush1.bf16.msra.mxu0 %v751
    %817 = vmatprep.subr.bf16.mxu0 0
    %818 = vmatpush1.bf16.msra.mxu0 0
    %819 = vmatprep.subr.bf16.mxu0 0
    %820 = vmatpush1.bf16.msra.mxu0 0
    %821 = vmatprep.subr.bf16.mxu0 0
    %822 = vmatpush1.bf16.msra.mxu0 0
    %823 = vmatprep.subr.bf16.mxu0 0
    %824 = vmatpush1.bf16.msra.mxu0 0
    %825 = vmatprep.subr.bf16.mxu0 0
    %826 = vmatpush1.bf16.msra.mxu0 0
    %827 = vmatprep.subr.bf16.mxu0 0
    %828 = vmatpush1.bf16.msra.mxu0 0
    %829 = vmatprep.subr.bf16.mxu0 0
    %830 = vmatpush1.bf16.msra.mxu0 0
    %831 = vmatprep.subr.bf16.mxu0 0
    %832 = vmatpush1.bf16.msra.mxu0 0
    %833 = vmatprep.mubr.bf16.mxu0 0
    %834 = vmatmul.mubr.bf16.gmra.mrb[0].mxu0 %v686
    %v835 = vpop.f32.mrb[0].mxu0
    %v836 = vadd.f32 %v710, %v835
    %v837 = vpop.f32.mrb[0].mxu0
    %v838 = vpop.f32.mrb[0].mxu0
    %v839 = vadd.f32 %v710, %v838
    %v840 = vpop.f32.mrb[0].mxu0
    %841 = vdwg.mxu0
    %842 = vmax.xlane.f32.xlu0 %v795
    %v843 = vpop.xlane.xlu0 %842
    %844 = vmax.xlane.f32.xlu0 %v798
    %v845 = vpop.xlane.xlu0 %844
    %v846 = vsub.f32 %v795, %v843
    %v847 = vsub.f32 %v798, %v845
    %v848 = vmul.f32 %v846, 1.442695
    %v849 = vpow.pop %v848
    %v850 = vmul.f32 %v847, 1.442695
    %v851 = vpow.pop %v850
    %852 = vadd.xlane.f32.xlu0 %v849
    %v853 = vpop.xlane.xlu0 %852
    %854 = vadd.xlane.f32.xlu0 %v851
    %v855 = vpop.xlane.xlu0 %854
    %v856 = vlog2.pop %v853
    %v857 = vmul.f32 %v856, 0.6931472
    %v858 = vlog2.pop %v855
    %v859 = vmul.f32 %v858, 0.6931472
    %v860 = vadd.f32 %v857, %v843
    %v861 = vadd.f32 %v859, %v845
    %v862 = vsub.f32 %v795, %v860
    %v863 = vsub.f32 %v798, %v861
    %864 = vst [vmem:[%s3] sm:$0xff] %v862
    %865 = vst [vmem:[%s3 + $0x8] sm:$0xff] %v863
    %866 = vmax.xlane.f32.xlu0 %v836
    %v867 = vpop.xlane.xlu0 %866
    %868 = vmax.xlane.f32.xlu0 %v839
    %v869 = vpop.xlane.xlu0 %868
    %v870 = vsub.f32 %v836, %v867
    %v871 = vsub.f32 %v839, %v869
    %v872 = vmul.f32 %v870, 1.442695
    %v873 = vpow.pop %v872
    %v874 = vmul.f32 %v871, 1.442695
    %v875 = vpow.pop %v874
    %876 = vadd.xlane.f32.xlu0 %v873
    %v877 = vpop.xlane.xlu0 %876
    %878 = vadd.xlane.f32.xlu0 %v875
    %v879 = vpop.xlane.xlu0 %878
    %v880 = vlog2.pop %v877
    %v881 = vmul.f32 %v880, 0.6931472
    %v882 = vlog2.pop %v879
    %v883 = vmul.f32 %v882, 0.6931472
    %v884 = vadd.f32 %v881, %v867
    %v885 = vadd.f32 %v883, %v869
    %v886 = vsub.f32 %v836, %v884
    %v887 = vsub.f32 %v839, %v885
    %888 = vst [vmem:[%s3 + $0x10] sm:$0xff] %v886
    %889 = vst [vmem:[%s3 + $0x18] sm:$0xff] %v887
    // Predicated region
    $region18: #{classifier_forward.1} parent=1 // pred_check
      _
    $region19: #{classifier_forward.1} parent=1 // pred_check_branch
      %891 = sbr.rel (0) target = $region21
    $region20: #{classifier_forward.1} parent=1 // pred_region
      _
    $region21: #{classifier_forward.1} parent=1 // pred_fallthru
      _
    // Predicated region
    $region22: #{classifier_forward.1} parent=1 // pred_check
      _
    $region23: #{classifier_forward.1} parent=1 // pred_check_branch
      %893 = sbr.rel (0) target = $region25
    $region24: #{classifier_forward.1} parent=1 // pred_region
      _
    $region25: #{classifier_forward.1} parent=1 // pred_fallthru
      _
    %894 = vsyncpa [#allocation3], 1

</llo_original>
